<compile_context>
chip_gen: v5e
topology: v5e:2x2
jax: 0.10.0
libtpu: 0.0.40
codegen_flags: <defaults>
</compile_context>

<pallas_src>
import functools
import math

import numpy as np
import jax
import jax.numpy as jnp
from jax.experimental import pallas as pl
from jax.experimental.pallas import tpu as pltpu

# ----------------------------- scaled config --------------------------------
CFG = {
    "resolution": (8, 2),
    "fine_window_size": 5,
    "fine_concat_coarse_feat": True,
    "resnetfpn": {"initial_dim": 16, "block_dims": [16, 24, 32]},
    "coarse": {
        "d_model": 32,
        "nhead": 4,
        "layer_names": ["self", "cross"] * 4,
        "temp_bug_fix": False,
    },
    "match_coarse": {"thr": 0.2, "border_rm": 2, "dsmax_temperature": 0.1},
    "fine": {"d_model": 16, "nhead": 2, "layer_names": ["self", "cross"]},
}

_VMEM_LIMIT = 32 * 1024 * 1024


def _round_up(x, m):
    return ((x + m - 1) // m) * m


def _row_tile(length, max_tile):
    """Largest multiple-of-8 divisor of `length` <= min(max_tile, length//2); fall back to full."""
    if length < 16:
        return length
    cap = min(max_tile, length // 2)
    for t in range(cap, 7, -1):
        if length % t == 0 and t % 8 == 0:
            return t
    return length


# ===================== Pallas kernel 1: fused matmul =========================
def _matmul_epilogue_kernel(w_ref, at_ref, s_ref, b_ref, o_ref, *, act):
    # out tile = (W @ A^T) * scale + bias, then optional activation (lane-dense output).
    acc = jnp.dot(w_ref[...], at_ref[...], preferred_element_type=jnp.float32)
    y = acc * s_ref[...] + b_ref[...]
    if act == 1:                       # ReLU
        y = jnp.maximum(y, 0.0)
    elif act == 2:                     # LeakyReLU(0.01)
        y = jnp.where(y >= 0.0, y, 0.01 * y)
    o_ref[...] = y


@functools.partial(jax.jit, static_argnames=("act",))
def pallas_matmul_t(w, at, scale, bias, *, act=0):
    """w: (Cout, K), at: (K, M) -> (Cout, M) f32 with fused scale/bias/activation.

    Output is "transposed" so the large M axis sits on the 128-lane axis (lane-dense
    unmasked stores); M is tiled (parallel grid axis -> shards across v7x's 2 TCs).
    """
    cout, k = w.shape
    m = at.shape[1]
    tm_max = 512
    if m <= tm_max:
        mp = _round_up(m, 128)
        tm = mp
    else:
        mp = _round_up(m, tm_max)
        tm = tm_max
    if mp != m:
        at = jnp.pad(at, ((0, 0), (0, mp - m)))
    out = pl.pallas_call(
        functools.partial(_matmul_epilogue_kernel, act=act),
        out_shape=jax.ShapeDtypeStruct((cout, mp), jnp.float32),
        grid=(mp // tm,),
        in_specs=[
            pl.BlockSpec((cout, k), lambda i: (0, 0)),     # weights resident
            pl.BlockSpec((k, tm), lambda i: (0, i)),
            pl.BlockSpec((cout, 1), lambda i: (0, 0)),
            pl.BlockSpec((cout, 1), lambda i: (0, 0)),
        ],
        out_specs=pl.BlockSpec((cout, tm), lambda i: (0, i)),
        compiler_params=pltpu.CompilerParams(
            dimension_semantics=("parallel",), vmem_limit_bytes=_VMEM_LIMIT),
    )(w.astype(jnp.bfloat16), at.astype(jnp.bfloat16),
      scale.reshape(cout, 1).astype(jnp.float32),
      bias.reshape(cout, 1).astype(jnp.float32))
    return out[:, :m]


# ============== Pallas kernel 2: fused LoFTR encoder layer ====================
def _encoder_layer_kernel(x_ref, src_ref, wq_ref, wkv_ref, wmerge_ref,
                          g1_ref, b1_ref, wmlp1_ref, wmlp2_ref, g2_ref, b2_ref,
                          o_ref, *, nhead):
    xb = x_ref[0]                          # (TL, C) bf16 (query rows tile)
    sb = src_ref[0]                        # (S, C)  bf16 (full source)
    x = xb.astype(jnp.float32)
    c = x.shape[-1]
    d = c // nhead
    s_len = sb.shape[0]

    q = jnp.dot(xb, wq_ref[...], preferred_element_type=jnp.float32)        # (TL, C)
    kv = jnp.dot(sb, wkv_ref[...], preferred_element_type=jnp.float32)      # (S, 2C)
    k = kv[:, :c]
    v = kv[:, c:]

    # elu(x) + 1 feature map (kept in f32 on the VPU)
    Q = jnp.where(q > 0, q + 1.0, jnp.exp(jnp.minimum(q, 0.0)))
    K = jnp.where(k > 0, k + 1.0, jnp.exp(jnp.minimum(k, 0.0)))

    # per-head block-diagonal mask on a full (C, C) "KV" (all heads stacked on lanes)
    row_h = jax.lax.broadcasted_iota(jnp.int32, (c, c), 0) // d
    col_h = jax.lax.broadcasted_iota(jnp.int32, (c, c), 1) // d
    head_mask = (row_h == col_h).astype(jnp.float32)

    v_scaled = v * (1.0 / s_len)
    KV = jax.lax.dot_general(
        K.astype(jnp.bfloat16), v_scaled.astype(jnp.bfloat16),
        (((0,), (0,)), ((), ())), preferred_element_type=jnp.float32)       # (C, C)
    KV = KV * head_mask

    k_sum = jnp.sum(K, axis=0, keepdims=True)                               # (1, C)
    denom = jax.lax.dot_general(
        Q * k_sum, head_mask, (((1,), (0,)), ((), ())),
        preferred_element_type=jnp.float32)                                 # per-head sums, replicated
    Z = 1.0 / (denom + 1e-6)
    num = jnp.dot(Q.astype(jnp.bfloat16), KV.astype(jnp.bfloat16),
                  preferred_element_type=jnp.float32)                       # (TL, C)
    message = num * Z * float(s_len)

    # merge + LayerNorm1
    msg = jnp.dot(message.astype(jnp.bfloat16), wmerge_ref[...],
                  preferred_element_type=jnp.float32)
    mu = jnp.mean(msg, axis=-1, keepdims=True)
    var = jnp.mean((msg - mu) ** 2, axis=-1, keepdims=True)
    msg = (msg - mu) * jax.lax.rsqrt(var + 1e-5) * g1_ref[...] + b1_ref[...]

    # FFN (concat -> Linear -> ReLU -> Linear) + LayerNorm2 + residual
    cat = jnp.concatenate([x, msg], axis=-1)                                # (TL, 2C)
    h = jnp.dot(cat.astype(jnp.bfloat16), wmlp1_ref[...],
                preferred_element_type=jnp.float32)
    h = jnp.maximum(h, 0.0)
    h = jnp.dot(h.astype(jnp.bfloat16), wmlp2_ref[...],
                preferred_element_type=jnp.float32)
    mu2 = jnp.mean(h, axis=-1, keepdims=True)
    var2 = jnp.mean((h - mu2) ** 2, axis=-1, keepdims=True)
    h = (h - mu2) * jax.lax.rsqrt(var2 + 1e-5) * g2_ref[...] + b2_ref[...]

    o_ref[0] = x + h


@functools.partial(jax.jit, static_argnames=("nhead",))
def pallas_encoder_layer(x, src, wq, wkv, wmerge, g1, b1, wmlp1, wmlp2, g2, b2, *, nhead):
    B, L, C = x.shape
    S = src.shape[1]
    tl = _row_tile(L, 2048)
    n_l = L // tl
    w2 = lambda b, l: (0, 0)
    return pl.pallas_call(
        functools.partial(_encoder_layer_kernel, nhead=nhead),
        out_shape=jax.ShapeDtypeStruct((B, L, C), jnp.float32),
        grid=(B, n_l),
        in_specs=[
            pl.BlockSpec((1, tl, C), lambda b, l: (b, l, 0)),
            pl.BlockSpec((1, S, C), lambda b, l: (b, 0, 0)),
            pl.BlockSpec((C, C), w2),
            pl.BlockSpec((C, 2 * C), w2),
            pl.BlockSpec((C, C), w2),
            pl.BlockSpec((1, C), w2),
            pl.BlockSpec((1, C), w2),
            pl.BlockSpec((2 * C, 2 * C), w2),
            pl.BlockSpec((2 * C, C), w2),
            pl.BlockSpec((1, C), w2),
            pl.BlockSpec((1, C), w2),
        ],
        out_specs=pl.BlockSpec((1, tl, C), lambda b, l: (b, l, 0)),
        compiler_params=pltpu.CompilerParams(
            dimension_semantics=("parallel", "parallel"),
            vmem_limit_bytes=_VMEM_LIMIT),
    )(x.astype(jnp.bfloat16), src.astype(jnp.bfloat16),
      wq, wkv, wmerge, g1, b1, wmlp1, wmlp2, g2, b2)


# ================ Pallas kernel 3: tiled dual-softmax =========================
def _ds_stats_kernel(f0_ref, f1_ref, cmax_ref, csum_ref, *, inv_scale):
    # Pass 1: online column max / sum-of-exp, accumulated across L row-tiles.
    s_dim = f1_ref.shape[1]
    sim = jax.lax.dot_general(
        f0_ref[0], f1_ref[0], (((1,), (1,)), ((), ())),
        preferred_element_type=jnp.float32) * inv_scale                     # (TL, S)

    @pl.when(pl.program_id(1) == 0)
    def _():
        cmax_ref[0] = jnp.full((1, s_dim), -jnp.inf, jnp.float32)
        csum_ref[0] = jnp.zeros((1, s_dim), jnp.float32)

    old_max = cmax_ref[0]
    new_max = jnp.maximum(old_max, jnp.max(sim, axis=0, keepdims=True))
    csum_ref[0] = (csum_ref[0] * jnp.exp(old_max - new_max)
                   + jnp.sum(jnp.exp(sim - new_max), axis=0, keepdims=True))
    cmax_ref[0] = new_max


def _ds_conf_kernel(f0_ref, f1_ref, cmax_ref, csum_ref, o_ref, *, inv_scale):
    # Pass 2: conf = softmax over L (via col stats) * softmax over S (full row in-tile).
    sim = jax.lax.dot_general(
        f0_ref[0], f1_ref[0], (((1,), (1,)), ((), ())),
        preferred_element_type=jnp.float32) * inv_scale                     # (TL, S)
    rmax = jnp.max(sim, axis=1, keepdims=True)
    rexp = jnp.exp(sim - rmax)
    rinv = pl.reciprocal(jnp.sum(rexp, axis=1, keepdims=True), approx=True)  # (TL, 1)
    cexp = jnp.exp(sim - cmax_ref[0])
    cinv = pl.reciprocal(csum_ref[0], approx=True)                           # (1, S)
    o_ref[0] = (rexp * rinv) * (cexp * cinv)


@functools.partial(jax.jit, static_argnames=("temperature",))
def pallas_dual_softmax(f0, f1, *, temperature):
    B, L, C = f0.shape
    S = f1.shape[1]
    inv_scale = 1.0 / (C * temperature)   # folds the 1/sqrt(C) of each operand + 1/temp
    tl = _row_tile(L, 512)
    n_l = L // tl
    f0b = f0.astype(jnp.bfloat16)
    f1b = f1.astype(jnp.bfloat16)
    per_b = lambda b, l: (b, 0, 0)

    cmax, csum = pl.pallas_call(
        functools.partial(_ds_stats_kernel, inv_scale=inv_scale),
        out_shape=(jax.ShapeDtypeStruct((B, 1, S), jnp.float32),
                   jax.ShapeDtypeStruct((B, 1, S), jnp.float32)),
        grid=(B, n_l),
        in_specs=[pl.BlockSpec((1, tl, C), lambda b, l: (b, l, 0)),
                  pl.BlockSpec((1, S, C), per_b)],
        out_specs=(pl.BlockSpec((1, 1, S), per_b),
                   pl.BlockSpec((1, 1, S), per_b)),
        compiler_params=pltpu.CompilerParams(
            dimension_semantics=("parallel", "arbitrary"),
            vmem_limit_bytes=_VMEM_LIMIT),
    )(f0b, f1b)

    conf = pl.pallas_call(
        functools.partial(_ds_conf_kernel, inv_scale=inv_scale),
        out_shape=jax.ShapeDtypeStruct((B, L, S), jnp.float32),
        grid=(B, n_l),
        in_specs=[pl.BlockSpec((1, tl, C), lambda b, l: (b, l, 0)),
                  pl.BlockSpec((1, S, C), per_b),
                  pl.BlockSpec((1, 1, S), per_b),
                  pl.BlockSpec((1, 1, S), per_b)],
        out_specs=pl.BlockSpec((1, tl, S), lambda b, l: (b, l, 0)),
        compiler_params=pltpu.CompilerParams(
            dimension_semantics=("parallel", "parallel"),
            vmem_limit_bytes=_VMEM_LIMIT),
    )(f0b, f1b, cmax, csum)
    return conf


# ============================ plain-JAX glue =================================
@functools.partial(jax.jit, static_argnames=("stride", "padding", "act"))
def _conv2d_fused(x, w, scale, bias, *, stride, padding, act):
    """x: (N, Cin, H, W) NCHW, w: (Cout, Cin, kh, kw). im2col + fused Pallas matmul."""
    N, Cin, H, Wd = x.shape
    Cout, _, kh, kw = w.shape
    xp = jnp.pad(x, ((0, 0), (0, 0), (padding, padding), (padding, padding)))
    xp = xp.astype(jnp.bfloat16)
    Ho = (H + 2 * padding - kh) // stride + 1
    Wo = (Wd + 2 * padding - kw) // stride + 1
    cols = []
    for di in range(kh):
        for dj in range(kw):
            cols.append(xp[:, :, di:di + stride * Ho:stride, dj:dj + stride * Wo:stride])
    # TODO(synk): im2col patches are still materialized in HBM by XLA before the matmul
    # kernel; a dedicated Pallas conv forming patches in VMEM would remove this blow-up.
    patches = jnp.stack(cols, axis=2)                              # (N, Cin, kh*kw, Ho, Wo)
    at = patches.transpose(1, 2, 0, 3, 4).reshape(Cin * kh * kw, N * Ho * Wo)
    wf = w.reshape(Cout, Cin * kh * kw)
    out = pallas_matmul_t(wf, at, scale, bias, act=act)            # (Cout, N*Ho*Wo)
    return out.reshape(Cout, N, Ho, Wo).transpose(1, 0, 2, 3)


def fold_bn(bn, eps=1e-5):
    s = bn["gamma"] / jnp.sqrt(bn["var"] + eps)
    return s, bn["beta"] - bn["mean"] * s


def conv_bn_act(x, w, bn=None, *, stride=1, padding=0, act=0):
    cout = w.shape[0]
    if bn is None:
        scale = jnp.ones((cout,), jnp.float32)
        bias = jnp.zeros((cout,), jnp.float32)
    else:
        scale, bias = fold_bn(bn)
    return _conv2d_fused(x, w, scale, bias, stride=stride, padding=padding, act=act)


def linear(x, w, b=None):
    shp = x.shape
    cout = w.shape[0]
    x2 = x.reshape(-1, shp[-1]).T                                  # (Cin, M)
    bias = b if b is not None else jnp.zeros((cout,), jnp.float32)
    scale = jnp.ones((cout,), jnp.float32)
    y = pallas_matmul_t(w, x2, scale, bias, act=0)                 # (Cout, M)
    return y.T.reshape(*shp[:-1], cout)


def upsample2x_bilinear(x):
    """F.interpolate(scale_factor=2, mode='bilinear', align_corners=True)."""
    N, C, H, Wd = x.shape
    Ho, Wo = 2 * H, 2 * Wd
    yi = jnp.arange(Ho, dtype=jnp.float32) * (H - 1) / (Ho - 1)
    xi = jnp.arange(Wo, dtype=jnp.float32) * (Wd - 1) / (Wo - 1)
    y0 = jnp.floor(yi).astype(jnp.int32)
    y1 = jnp.minimum(y0 + 1, H - 1)
    wy = (yi - y0)[None, None, :, None]
    x0 = jnp.floor(xi).astype(jnp.int32)
    x1 = jnp.minimum(x0 + 1, Wd - 1)
    wx = (xi - x0)[None, None, None, :]
    top, bot = x[:, :, y0, :], x[:, :, y1, :]

    def hlerp(v):
        return v[:, :, :, x0] * (1.0 - wx) + v[:, :, :, x1] * wx

    return hlerp(top) * (1.0 - wy) + hlerp(bot) * wy


# ------------------------------ backbone -------------------------------------
def basic_block(x, p):
    s = p["stride"]
    y = conv_bn_act(x, p["conv1_w"], p["bn1"], stride=s, padding=1, act=1)   # conv+BN+ReLU fused
    y = conv_bn_act(y, p["conv2_w"], p["bn2"], stride=1, padding=1, act=0)   # conv+BN fused
    if s != 1:
        x = conv_bn_act(x, p["down_w"], p["down_bn"], stride=s, padding=0, act=0)
    return jax.nn.relu(x + y)


def backbone_forward(p, x):
    """ResNetFPN_8_2: returns (coarse 1/8 feats, fine 1/2 feats), NCHW."""
    x0 = conv_bn_act(x, p["conv1_w"], p["bn1"], stride=2, padding=3, act=1)
    x1 = x0
    for bp in p["layer1"]:
        x1 = basic_block(x1, bp)
    x2 = x1
    for bp in p["layer2"]:
        x2 = basic_block(x2, bp)
    x3 = x2
    for bp in p["layer3"]:
        x3 = basic_block(x3, bp)

    x3_out = conv_bn_act(x3, p["layer3_outconv_w"], None, stride=1, padding=0, act=0)
    x3_out_2x = upsample2x_bilinear(x3_out)
    x2_out = conv_bn_act(x2, p["layer2_outconv_w"], None, stride=1, padding=0, act=0)
    t = conv_bn_act(x2_out + x3_out_2x, p["layer2_outconv2"]["c1_w"],
                    p["layer2_outconv2"]["bn"], stride=1, padding=1, act=2)  # conv+BN+LeakyReLU
    x2_out = conv_bn_act(t, p["layer2_outconv2"]["c2_w"], None, stride=1, padding=1, act=0)

    x2_out_2x = upsample2x_bilinear(x2_out)
    x1_out = conv_bn_act(x1, p["layer1_outconv_w"], None, stride=1, padding=0, act=0)
    t = conv_bn_act(x1_out + x2_out_2x, p["layer1_outconv2"]["c1_w"],
                    p["layer1_outconv2"]["bn"], stride=1, padding=1, act=2)
    x1_out = conv_bn_act(t, p["layer1_outconv2"]["c2_w"], None, stride=1, padding=1, act=0)
    return x3_out, x1_out


# -------------------------- position encoding --------------------------------
def position_encoding_sine(x, d_model, temp_bug_fix=False):
    _, _, H, Wd = x.shape
    y_pos = np.cumsum(np.ones((H, Wd), np.float32), axis=0)
    x_pos = np.cumsum(np.ones((H, Wd), np.float32), axis=1)
    if temp_bug_fix:
        div_term = np.exp(
            np.arange(0, d_model // 2, 2, dtype=np.float32)
            * (-math.log(10000.0) / (d_model // 2))
        )
    else:
        # NOTE: intentionally replicates the upstream "temp bug" (integer-floored
        # exponent divisor) kept in kornia for backward compatibility.
        div_term = np.exp(
            np.arange(0, d_model // 2, 2, dtype=np.float32)
            * (-math.log(10000.0) / d_model // 2)
        )
    div_term = div_term[:, None, None]
    pe = np.zeros((d_model, H, Wd), np.float32)
    pe[0::4] = np.sin(x_pos[None] * div_term)
    pe[1::4] = np.cos(x_pos[None] * div_term)
    pe[2::4] = np.sin(y_pos[None] * div_term)
    pe[3::4] = np.cos(y_pos[None] * div_term)
    return x + jnp.asarray(pe)[None]


# ------------------------ LoFTR transformer glue ------------------------------
def _encoder_args(p):
    return (p["wq"], p["wkv"], p["wmerge"], p["g1"], p["b1"],
            p["wmlp1"], p["wmlp2"], p["g2"], p["b2"])


def local_feature_transformer(feat0, feat1, prep_layers, layer_names, nhead):
    for name, p in zip(layer_names, prep_layers):
        args = _encoder_args(p)
        if name == "self":
            feat0 = pallas_encoder_layer(feat0, feat0, *args, nhead=nhead)
            feat1 = pallas_encoder_layer(feat1, feat1, *args, nhead=nhead)
        else:  # cross (sequential, second call sees updated feat0)
            feat0 = pallas_encoder_layer(feat0, feat1, *args, nhead=nhead)
            feat1 = pallas_encoder_layer(feat1, feat0, *args, nhead=nhead)
    return feat0, feat1


# ---------------------------- coarse matching ---------------------------------
def coarse_matching(feat_c0, feat_c1, data, mcfg):
    conf = pallas_dual_softmax(feat_c0, feat_c1, temperature=mcfg["dsmax_temperature"])
    data["conf_matrix"] = conf
    thr, bd = mcfg["thr"], mcfg["border_rm"]
    B, L, S = conf.shape
    h0c, w0c = data["hw0_c"]
    h1c, w1c = data["hw1_c"]

    mask = conf > thr
    m5 = mask.reshape(B, h0c, w0c, h1c, w1c)
    int0 = np.zeros((h0c, w0c), dtype=bool)
    int0[bd:h0c - bd, bd:w0c - bd] = True
    int1 = np.zeros((h1c, w1c), dtype=bool)
    int1[bd:h1c - bd, bd:w1c - bd] = True
    m5 = m5 & jnp.asarray(int0)[None, :, :, None, None] & jnp.asarray(int1)[None, None, None, :, :]
    mask = m5.reshape(B, L, S)
    mask = (
        mask
        & (conf == jnp.max(conf, axis=2, keepdims=True))
        & (conf == jnp.max(conf, axis=1, keepdims=True))
    )
    mask_v = jnp.any(mask, axis=2)
    all_j = jnp.argmax(mask, axis=2)

    # TODO(synk): dynamic-count match extraction (torch.where) runs host-side; a
    # fixed-capacity top-k padding scheme would be needed for full end-to-end jit.
    b_ids, i_ids = np.nonzero(np.asarray(mask_v))
    j_ids = np.asarray(all_j)[b_ids, i_ids]
    mconf = np.asarray(conf)[b_ids, i_ids, j_ids]

    scale = data["hw0_i"][0] / data["hw0_c"][0]
    mkpts0_c = np.stack([i_ids % w0c, i_ids // w0c], axis=1).astype(np.float32) * scale
    mkpts1_c = np.stack([j_ids % w1c, j_ids // w1c], axis=1).astype(np.float32) * scale
    valid = mconf != 0
    data["_valid"] = valid

    data.update(
        {
            "b_ids": jnp.asarray(b_ids, jnp.int32),
            "i_ids": jnp.asarray(i_ids, jnp.int32),
            "j_ids": jnp.asarray(j_ids, jnp.int32),
            "m_bids": jnp.asarray(b_ids[valid], jnp.int32),
            "mkpts0_c": jnp.asarray(mkpts0_c[valid], jnp.float32),
            "mkpts1_c": jnp.asarray(mkpts1_c[valid], jnp.float32),
            "mconf": jnp.asarray(mconf[valid], jnp.float32),
        }
    )


# ---------------------------- fine preprocess ---------------------------------
def unfold_windows(feat, win, stride):
    """F.unfold(kernel=(win,win), stride=stride, padding=win//2) rearranged to (N, L, ww, C)."""
    N, C, Hf, Wf = feat.shape
    pad = win // 2
    xp = jnp.pad(feat, ((0, 0), (0, 0), (pad, pad), (pad, pad)))
    Ho = (Hf + 2 * pad - win) // stride + 1
    Wo = (Wf + 2 * pad - win) // stride + 1
    cols = []
    for di in range(win):
        for dj in range(win):
            cols.append(xp[:, :, di:di + stride * Ho:stride, dj:dj + stride * Wo:stride])
    patches = jnp.stack(cols, axis=2)                       # (N, C, ww, Ho, Wo)
    return patches.transpose(0, 3, 4, 2, 1).reshape(N, Ho * Wo, win * win, C)


def fine_preprocess(fp, feat_f0, feat_f1, feat_c0, feat_c1, data, cfg):
    win = cfg["fine_window_size"]
    cf = cfg["fine"]["d_model"]
    data["W"] = win
    stride = data["hw0_f"][0] // data["hw0_c"][0]
    b_ids = np.asarray(data["b_ids"])
    i_ids = np.asarray(data["i_ids"])
    j_ids = np.asarray(data["j_ids"])
    M = int(b_ids.shape[0])
    data["_n_fine"] = M
    if M == 0:
        z = jnp.zeros((0, win * win, cf), jnp.float32)
        return z, z
    # bucket the match count to the next power of two (>= 8): avoids per-M recompiles
    Mp = max(8, 1 << (M - 1).bit_length())
    pad = Mp - M
    b_p = np.concatenate([b_ids, np.zeros((pad,), b_ids.dtype)])
    i_p = np.concatenate([i_ids, np.zeros((pad,), i_ids.dtype)])
    j_p = np.concatenate([j_ids, np.zeros((pad,), j_ids.dtype)])

    f0u = unfold_windows(feat_f0, win, stride)[b_p, i_p]     # (Mp, ww, Cf)
    f1u = unfold_windows(feat_f1, win, stride)[b_p, j_p]
    if cfg["fine_concat_coarse_feat"]:
        c_win = linear(
            jnp.concatenate([feat_c0[b_p, i_p], feat_c1[b_p, j_p]], 0),
            fp["down_proj_w"],
            fp["down_proj_b"],
        )                                                     # (2Mp, Cf)
        both = jnp.concatenate([f0u, f1u], 0)                 # (2Mp, ww, Cf)
        c_rep = jnp.broadcast_to(c_win[:, None, :], (2 * Mp, win * win, cf))
        merged = linear(jnp.concatenate([both, c_rep], -1), fp["merge_w"], fp["merge_b"])
        f0u, f1u = merged[:Mp], merged[Mp:]
    return f0u, f1u


# ----------------------------- fine matching ----------------------------------
def fine_matching(feat_f0, feat_f1, data):
    M, WW, C = feat_f0.shape
    win = int(round(math.sqrt(WW)))
    scale = data["hw0_i"][0] / data["hw0_f"][0]
    if M == 0:
        data["mkpts0_f"] = data["mkpts0_c"]
        data["mkpts1_f"] = data["mkpts1_c"]
        return
    picked = feat_f0[:, WW // 2, :]                                 # (M, C)
    sim = jnp.einsum("mc,mrc->mr", picked, feat_f1)                 # (M, WW)
    heatmap = jax.nn.softmax(sim / math.sqrt(C), axis=1)
    xs = jnp.linspace(-1.0, 1.0, win)
    gy, gx = jnp.meshgrid(xs, xs, indexing="ij")
    grid = jnp.stack([gx.reshape(-1), gy.reshape(-1)], -1)          # (WW, 2) = (x, y)
    coords = heatmap @ grid                                         # (M, 2)
    var = jnp.sum(grid[None] ** 2 * heatmap[:, :, None], 1) - coords ** 2
    std = jnp.sum(jnp.sqrt(jnp.maximum(var, 1e-10)), -1)
    data["expec_f"] = jnp.concatenate([coords, std[:, None]], -1)
    # index the refinement deltas with the same validity mask used for mkpts*_c
    delta = coords * (win // 2) * scale
    valid_idx = jnp.asarray(np.nonzero(data["_valid"])[0], jnp.int32)
    data["mkpts0_f"] = data["mkpts0_c"]
    data["mkpts1_f"] = data["mkpts1_c"] + delta[valid_idx]


# ---------------------------- parameter init ----------------------------------
class PRNG:
    def __init__(self, seed):
        self._key = jax.random.PRNGKey(seed)

    def __call__(self):
        self._key, sub = jax.random.split(self._key)
        return sub


def conv_w(rng, cout, cin, k):
    return jax.random.normal(rng(), (cout, cin, k, k), jnp.float32) / math.sqrt(cin * k * k)


def bn_p(c):
    return {
        "gamma": jnp.ones((c,), jnp.float32),
        "beta": jnp.zeros((c,), jnp.float32),
        "mean": jnp.zeros((c,), jnp.float32),
        "var": jnp.ones((c,), jnp.float32),
    }


def lin_w(rng, cout, cin):
    return jax.random.normal(rng(), (cout, cin), jnp.float32) / math.sqrt(cin)


def ln_p(c):
    return {"gamma": jnp.ones((c,), jnp.float32), "beta": jnp.zeros((c,), jnp.float32)}


def init_basic_block(rng, cin, cout, stride):
    p = {
        "conv1_w": conv_w(rng, cout, cin, 3),
        "bn1": bn_p(cout),
        "conv2_w": conv_w(rng, cout, cout, 3),
        "bn2": bn_p(cout),
        "stride": stride,
    }
    if stride != 1:
        p["down_w"] = conv_w(rng, cout, cin, 1)
        p["down_bn"] = bn_p(cout)
    return p


def init_backbone(rng, cfg):
    init_dim = cfg["resnetfpn"]["initial_dim"]
    bd = cfg["resnetfpn"]["block_dims"]
    return {
        "conv1_w": conv_w(rng, init_dim, 1, 7),
        "bn1": bn_p(init_dim),
        "layer1": [init_basic_block(rng, init_dim, bd[0], 1), init_basic_block(rng, bd[0], bd[0], 1)],
        "layer2": [init_basic_block(rng, bd[0], bd[1], 2), init_basic_block(rng, bd[1], bd[1], 1)],
        "layer3": [init_basic_block(rng, bd[1], bd[2], 2), init_basic_block(rng, bd[2], bd[2], 1)],
        "layer3_outconv_w": conv_w(rng, bd[2], bd[2], 1),
        "layer2_outconv_w": conv_w(rng, bd[2], bd[1], 1),
        "layer2_outconv2": {"c1_w": conv_w(rng, bd[2], bd[2], 3), "bn": bn_p(bd[2]),
                            "c2_w": conv_w(rng, bd[1], bd[2], 3)},
        "layer1_outconv_w": conv_w(rng, bd[1], bd[0], 1),
        "layer1_outconv2": {"c1_w": conv_w(rng, bd[1], bd[1], 3), "bn": bn_p(bd[1]),
                            "c2_w": conv_w(rng, bd[0], bd[1], 3)},
    }


def init_encoder_layer(rng, d_model):
    return {
        "q_w": lin_w(rng, d_model, d_model),
        "k_w": lin_w(rng, d_model, d_model),
        "v_w": lin_w(rng, d_model, d_model),
        "merge_w": lin_w(rng, d_model, d_model),
        "norm1": ln_p(d_model),
        "mlp1_w": lin_w(rng, 2 * d_model, 2 * d_model),
        "mlp2_w": lin_w(rng, d_model, 2 * d_model),
        "norm2": ln_p(d_model),
    }


def prep_encoder_layer(p):
    """Pre-transpose / fuse / bf16-cast encoder weights for the fused Pallas layer kernel."""
    c = p["q_w"].shape[0]
    return {
        "wq": p["q_w"].T.astype(jnp.bfloat16),
        "wkv": jnp.concatenate([p["k_w"].T, p["v_w"].T], axis=1).astype(jnp.bfloat16),
        "wmerge": p["merge_w"].T.astype(jnp.bfloat16),
        "g1": p["norm1"]["gamma"].reshape(1, c).astype(jnp.float32),
        "b1": p["norm1"]["beta"].reshape(1, c).astype(jnp.float32),
        "wmlp1": p["mlp1_w"].T.astype(jnp.bfloat16),
        "wmlp2": p["mlp2_w"].T.astype(jnp.bfloat16),
        "g2": p["norm2"]["gamma"].reshape(1, c).astype(jnp.float32),
        "b2": p["norm2"]["beta"].reshape(1, c).astype(jnp.float32),
    }


def init_fine_preprocess(rng, cfg):
    cc, cf = cfg["coarse"]["d_model"], cfg["fine"]["d_model"]
    return {
        "down_proj_w": lin_w(rng, cf, cc),
        "down_proj_b": jnp.zeros((cf,), jnp.float32),
        "merge_w": lin_w(rng, cf, 2 * cf),
        "merge_b": jnp.zeros((cf,), jnp.float32),
    }


def init_loftr_params(seed, cfg):
    rng = PRNG(seed)
    backbone = init_backbone(rng, cfg)
    coarse_raw = [init_encoder_layer(rng, cfg["coarse"]["d_model"])
                  for _ in cfg["coarse"]["layer_names"]]
    fine_pre = init_fine_preprocess(rng, cfg)
    fine_raw = [init_encoder_layer(rng, cfg["fine"]["d_model"])
                for _ in cfg["fine"]["layer_names"]]
    return {
        "backbone": backbone,
        "coarse_layers": [prep_encoder_layer(p) for p in coarse_raw],
        "fine_preprocess": fine_pre,
        "fine_layers": [prep_encoder_layer(p) for p in fine_raw],
    }


# ------------------------------ full forward ----------------------------------
def loftr_forward(params, cfg, img0, img1):
    data = {}
    bs = img0.shape[0]
    hw0_i, hw1_i = img0.shape[2:], img1.shape[2:]
    if hw0_i == hw1_i:
        feats_c, feats_f = backbone_forward(params["backbone"], jnp.concatenate([img0, img1], 0))
        feat_c0, feat_c1 = feats_c[:bs], feats_c[bs:]
        feat_f0, feat_f1 = feats_f[:bs], feats_f[bs:]
    else:
        feat_c0, feat_f0 = backbone_forward(params["backbone"], img0)
        feat_c1, feat_f1 = backbone_forward(params["backbone"], img1)

    data.update(
        {"bs": bs, "hw0_i": hw0_i, "hw1_i": hw1_i,
         "hw0_c": feat_c0.shape[2:], "hw1_c": feat_c1.shape[2:],
         "hw0_f": feat_f0.shape[2:], "hw1_f": feat_f1.shape[2:]}
    )

    dmc = cfg["coarse"]["d_model"]
    fc0 = position_encoding_sine(feat_c0, dmc, cfg["coarse"]["temp_bug_fix"])
    fc0 = fc0.transpose(0, 2, 3, 1).reshape(bs, -1, dmc)
    fc1 = position_encoding_sine(feat_c1, dmc, cfg["coarse"]["temp_bug_fix"])
    fc1 = fc1.transpose(0, 2, 3, 1).reshape(bs, -1, dmc)

    # TODO(synk): optional mask0/mask1 (padded-image masked attention) path not implemented.
    fc0, fc1 = local_feature_transformer(
        fc0, fc1, params["coarse_layers"], cfg["coarse"]["layer_names"], cfg["coarse"]["nhead"]
    )
    coarse_matching(fc0, fc1, data, cfg["match_coarse"])

    f0u, f1u = fine_preprocess(params["fine_preprocess"], feat_f0, feat_f1, fc0, fc1, data, cfg)
    if f0u.shape[0] != 0:
        f0u, f1u = local_feature_transformer(
            f0u, f1u, params["fine_layers"], cfg["fine"]["layer_names"], cfg["fine"]["nhead"]
        )
        n_fine = data["_n_fine"]
        f0u, f1u = f0u[:n_fine], f1u[:n_fine]
    fine_matching(f0u, f1u, data)

    return {
        "keypoints0": data["mkpts0_f"],
        "keypoints1": data["mkpts1_f"],
        "confidence": data["mconf"],
        "batch_indexes": data["b_ids"],
    }


if __name__ == "__main__":
    params = init_loftr_params(0, CFG)
    key = jax.random.PRNGKey(0)
    k0, k1 = jax.random.split(key)
    img0 = jax.random.uniform(k0, (1, 1, 64, 64), dtype=jnp.float32)
    img1 = jax.random.uniform(k1, (1, 1, 64, 64), dtype=jnp.float32)
    out = loftr_forward(params, CFG, img0, img1)
    for v in out.values():
        jax.block_until_ready(v)
    print("KERNEL_OK")
</pallas_src>

<mosaic_0001>
module attributes {stable_mosaic.version = 11 : i64} {
  func.func @_matmul_epilogue_kernel(%arg0: i32, %arg1: memref<16x49xbf16, #tpu.memory_space<vmem>>, %arg2: memref<49x512xbf16, #tpu.memory_space<vmem>>, %arg3: memref<16x1xf32, #tpu.memory_space<vmem>>, %arg4: memref<16x1xf32, #tpu.memory_space<vmem>>, %arg5: memref<16x512xf32, #tpu.memory_space<vmem>>) attributes {dimension_semantics = [#tpu.dimension_semantics<parallel>], iteration_bounds = array<i64: 4>, scalar_prefetch = 0 : i64, scratch_operands = 0 : i64, tpu.core_type = #tpu.core_type<tc>, window_params = [{pipeline_mode = #tpu.pipeline_mode<synchronous>, transform_indices = @transform_0, window_bounds = array<i64: 16, 49>}, {transform_indices = @transform_1, window_bounds = array<i64: 49, 512>}, {pipeline_mode = #tpu.pipeline_mode<synchronous>, transform_indices = @transform_2, window_bounds = array<i64: 16, 1>}, {pipeline_mode = #tpu.pipeline_mode<synchronous>, transform_indices = @transform_3, window_bounds = array<i64: 16, 1>}, {transform_indices = @transform_4, window_bounds = array<i64: 16, 512>}]} {
    %c0 = arith.constant 0 : index
    %c0_0 = arith.constant 0 : index
    %0 = vector.load %arg1[%c0, %c0_0] : memref<16x49xbf16, #tpu.memory_space<vmem>>, vector<16x49xbf16>
    %c0_1 = arith.constant 0 : index
    %c0_2 = arith.constant 0 : index
    %1 = vector.load %arg2[%c0_1, %c0_2] : memref<49x512xbf16, #tpu.memory_space<vmem>>, vector<49x512xbf16>
    %cst = arith.constant dense<0.000000e+00> : vector<16x512xf32>
    %2 = tpu.matmul %0, %1, %cst {dimension_numbers = #tpu.dot_dimension_numbers<[1], [0], [0], [1], [0, 0, 1, 1], [], []>} : vector<16x49xbf16>, vector<49x512xbf16>, vector<16x512xf32> -> vector<16x512xf32>
    %c0_3 = arith.constant 0 : index
    %c0_4 = arith.constant 0 : index
    %3 = vector.load %arg3[%c0_3, %c0_4] : memref<16x1xf32, #tpu.memory_space<vmem>>, vector<16x1xf32>
    %4 = vector.broadcast %3 : vector<16x1xf32> to vector<16x512xf32>
    %5 = arith.mulf %2, %4 : vector<16x512xf32>
    %c0_5 = arith.constant 0 : index
    %c0_6 = arith.constant 0 : index
    %6 = vector.load %arg4[%c0_5, %c0_6] : memref<16x1xf32, #tpu.memory_space<vmem>>, vector<16x1xf32>
    %7 = vector.broadcast %6 : vector<16x1xf32> to vector<16x512xf32>
    %8 = arith.addf %5, %7 : vector<16x512xf32>
    %cst_7 = arith.constant 0.000000e+00 : f32
    %9 = vector.broadcast %cst_7 : f32 to vector<16x512xf32>
    %10 = arith.maximumf %8, %9 : vector<16x512xf32>
    %c0_8 = arith.constant 0 : index
    %c0_9 = arith.constant 0 : index
    %11 = vector.load %arg5[%c0_8, %c0_9] : memref<16x512xf32, #tpu.memory_space<vmem>>, vector<16x512xf32>
    tpu.vector_store %arg5[%c0_8, %c0_9], %10 {strides = array<i32>} : memref<16x512xf32, #tpu.memory_space<vmem>>, vector<16x512xf32>,
    return
  }
  func.func @transform_0(%arg0: i32) -> (i32, i32) {
    %c0_i32 = arith.constant 0 : i32
    %c0_i32_0 = arith.constant 0 : i32
    %c0_i32_1 = arith.constant 0 : i32
    return %c0_i32, %c0_i32_0 : i32, i32
  }
  func.func @transform_1(%arg0: i32) -> (i32, i32) {
    %c0_i32 = arith.constant 0 : i32
    %c0_i32_0 = arith.constant 0 : i32
    return %c0_i32, %arg0 : i32, i32
  }
  func.func @transform_2(%arg0: i32) -> (i32, i32) {
    %c0_i32 = arith.constant 0 : i32
    %c0_i32_0 = arith.constant 0 : i32
    %c0_i32_1 = arith.constant 0 : i32
    return %c0_i32, %c0_i32_0 : i32, i32
  }
  func.func @transform_3(%arg0: i32) -> (i32, i32) {
    %c0_i32 = arith.constant 0 : i32
    %c0_i32_0 = arith.constant 0 : i32
    %c0_i32_1 = arith.constant 0 : i32
    return %c0_i32, %c0_i32_0 : i32, i32
  }
  func.func @transform_4(%arg0: i32) -> (i32, i32) {
    %c0_i32 = arith.constant 0 : i32
    %c0_i32_0 = arith.constant 0 : i32
    return %c0_i32, %arg0 : i32, i32
  }
}

</mosaic_0001>

<llo_original>
// kernel: pallas_matmul_t.1
$region0: #{pallas_matmul_t.1}
  #allocation0 [shape = 'u32[]', space=smem, size = 0x4, offset = 0x4, fixed_abs, tag = 'smem constant byte address 0x4 - core index']
  #allocation1 [shape = 'u32[72,128]{1,0:T(1,128)}', space=vmem, size = 0x9000, scoped, tag = 'internal scratch']
  %s0 = inlined_call_operand.vmem [shape: bf16[16,49], index: 0, kind: input, shape index: {}]
  %s1 = inlined_call_operand.hbm [shape: bf16[49,2048], index: 1, kind: input, shape index: {}]
  %s2 = inlined_call_operand.vmem [shape: f32[16,1], index: 2, kind: input, shape index: {}]
  %s3 = inlined_call_operand.vmem [shape: f32[16,1], index: 3, kind: input, shape index: {}]
  %s4 = inlined_call_operand.hbm [shape: f32[16,2048], index: 4, kind: output, shape index: {}]
  %s5 = sld [smem:[#allocation0]]
  $region53: #{pallas_matmul_t.1} parent=0
    _
  %s7 = ssub.s32 1, %s5
  %s8 = scalar_select 0, %s7, %s5
  $region1: #{pallas_matmul_t.1} parent=0
    #allocation2 [shape = 'u8[114688]{0}', space=vmem, size = 0x1c000, scoped, tag = 'input window, operand 1']
    #allocation3 [shape = 's32[2]{0}', space=sflag, size = 0x8, scoped, tag = 'scoped memory for pallas_matmul_t.1']
    #allocation4 [shape = 's32[2]{0}', space=sflag, size = 0x8, scoped, tag = 'scoped memory for pallas_matmul_t.1']
    #allocation5 [shape = 'u8[65536]{0}', space=vmem, size = 0x10000, scoped, tag = 'output window, operand 0']
    %9 = vsyncpa [#allocation3], 0
    %s10 = scalar_lea.sflag [#allocation3], 1
    %11 = vsyncpa %s10, 0
    %12 = vsyncpa [#allocation4], 0
    %s13 = scalar_lea.sflag [#allocation4], 1
    %14 = vsyncpa %s13, 0
    loop: start=0, step=1, limit=6
    $region2: #{pallas_matmul_t.1} parent=1 // loop_pre_header
      _
    $region3: #{pallas_matmul_t.1} parent=1 // loop_header
      %s16 = sphi 0, %s20
      %p17 = scmp.ge.s32.totalorder %s16, 6
      %s24 = sphi 0, %s24
      %s26 = sphi 0, %s24
      %s27 = sphi 0, %s26
      %s41 = sphi 0, %s27
      %s47 = sphi 0, %s49
      %s50 = sphi 0, %s47
      %s51 = sphi 0, %s50
      %s67 = sphi 0, %s51
      %s71 = sphi 0, %s71
      %s73 = sphi 0, %s71
      %s74 = sphi 0, %s73
      %s88 = sphi 0, %s74
      %s92 = sphi 0, %s92
      %s94 = sphi 0, %s92
      %s95 = sphi 0, %s94
      %s109 = sphi 0, %s95
      %s115 = sphi 0, %s117
      %s118 = sphi 0, %s115
      %s119 = sphi 0, %s118
      %s135 = sphi 0, %s119
    $region4: #{pallas_matmul_t.1} parent=1 // loop_header_branch
      %19 = sbr.rel (%p17) target = $region8
    $region5: #{pallas_matmul_t.1} parent=1 // loop_body
      %s21 = ssub.s32 %s16, 1
      %s22 = ssub.s32 %s16, 2
      %s23 = sadd.s32 %s16, 1
      %s25 = sadd.s32 %s24, 1
      %p28 = scmp.eq.s32.totalorder %s16, 3
      %p29 = scmp.ne.s32.totalorder %s24, %s26
      %p30 = scmp.eq.s32.totalorder %s16, 0
      %p31 = por %p29, %p30
      %p32 = scmp.ne.s32.totalorder %s24, %s26
      %p33 = scmp.eq.s32.totalorder %s21, 3
      %p34 = por %p32, %p33
      %p35 = scmp.ne.s32.totalorder %s26, %s27
      %p36 = scmp.eq.s32.totalorder %s21, 0
      %p37 = por %p35, %p36
      %p38 = scmp.ne.s32.totalorder %s26, %s27
      %p39 = scmp.eq.s32.totalorder %s22, 3
      %p40 = por %p38, %p39
      %p42 = scmp.ne.s32.totalorder %s27, %s41
      %p43 = scmp.eq.s32.totalorder %s22, 0
      %p44 = por %p42, %p43
      %s45 = ssub.s32 %s16, %s23
      %p46 = scmp.eq.s32.totalorder %s45, 0
      %s48 = sadd.s32 %s47, 1
      %s49 = scalar_select %p46, %s47, %s48
      %p52 = pneg %p46
      %p53 = scmp.eq.s32.totalorder %s16, 3
      %p54 = por %p52, %p53
      %p55 = scmp.ne.s32.totalorder %s47, %s50
      %p56 = scmp.eq.s32.totalorder %s16, 0
      %p57 = por %p55, %p56
      %p58 = scmp.ne.s32.totalorder %s47, %s50
      %p59 = scmp.eq.s32.totalorder %s21, 3
      %p60 = por %p58, %p59
      %p61 = scmp.ne.s32.totalorder %s50, %s51
      %p62 = scmp.eq.s32.totalorder %s21, 0
      %p63 = por %p61, %p62
      %p64 = scmp.ne.s32.totalorder %s50, %s51
      %p65 = scmp.eq.s32.totalorder %s22, 3
      %p66 = por %p64, %p65
      %p68 = scmp.ne.s32.totalorder %s51, %s67
      %p69 = scmp.eq.s32.totalorder %s22, 0
      %p70 = por %p68, %p69
      %s72 = sadd.s32 %s71, 1
      %p75 = scmp.eq.s32.totalorder %s16, 3
      %p76 = scmp.ne.s32.totalorder %s71, %s73
      %p77 = scmp.eq.s32.totalorder %s16, 0
      %p78 = por %p76, %p77
      %p79 = scmp.ne.s32.totalorder %s71, %s73
      %p80 = scmp.eq.s32.totalorder %s21, 3
      %p81 = por %p79, %p80
      %p82 = scmp.ne.s32.totalorder %s73, %s74
      %p83 = scmp.eq.s32.totalorder %s21, 0
      %p84 = por %p82, %p83
      %p85 = scmp.ne.s32.totalorder %s73, %s74
      %p86 = scmp.eq.s32.totalorder %s22, 3
      %p87 = por %p85, %p86
      %p89 = scmp.ne.s32.totalorder %s74, %s88
      %p90 = scmp.eq.s32.totalorder %s22, 0
      %p91 = por %p89, %p90
      %s93 = sadd.s32 %s92, 1
      %p96 = scmp.eq.s32.totalorder %s16, 3
      %p97 = scmp.ne.s32.totalorder %s92, %s94
      %p98 = scmp.eq.s32.totalorder %s16, 0
      %p99 = por %p97, %p98
      %p100 = scmp.ne.s32.totalorder %s92, %s94
      %p101 = scmp.eq.s32.totalorder %s21, 3
      %p102 = por %p100, %p101
      %p103 = scmp.ne.s32.totalorder %s94, %s95
      %p104 = scmp.eq.s32.totalorder %s21, 0
      %p105 = por %p103, %p104
      %p106 = scmp.ne.s32.totalorder %s94, %s95
      %p107 = scmp.eq.s32.totalorder %s22, 3
      %p108 = por %p106, %p107
      %p110 = scmp.ne.s32.totalorder %s95, %s109
      %p111 = scmp.eq.s32.totalorder %s22, 0
      %p112 = por %p110, %p111
      %s113 = ssub.s32 %s16, %s23
      %p114 = scmp.eq.s32.totalorder %s113, 0
      %s116 = sadd.s32 %s115, 1
      %s117 = scalar_select %p114, %s115, %s116
      %p120 = pneg %p114
      %p121 = scmp.eq.s32.totalorder %s16, 3
      %p122 = por %p120, %p121
      %p123 = scmp.ne.s32.totalorder %s115, %s118
      %p124 = scmp.eq.s32.totalorder %s16, 0
      %p125 = por %p123, %p124
      %p126 = scmp.ne.s32.totalorder %s115, %s118
      %p127 = scmp.eq.s32.totalorder %s21, 3
      %p128 = por %p126, %p127
      %p129 = scmp.ne.s32.totalorder %s118, %s119
      %p130 = scmp.eq.s32.totalorder %s21, 0
      %p131 = por %p129, %p130
      %p132 = scmp.ne.s32.totalorder %s118, %s119
      %p133 = scmp.eq.s32.totalorder %s22, 3
      %p134 = por %p132, %p133
      %p136 = scmp.ne.s32.totalorder %s119, %s135
      %p137 = scmp.eq.s32.totalorder %s22, 0
      %p138 = por %p136, %p137
      %p139 = scmp.le.s32.totalorder 1, %s16
      %p140 = scmp.lt.s32.totalorder %s16, 5
      %p141 = pnand %p139, %p140
      %p142 = pneg %p141
      // Predicated region
      $region9: #{pallas_matmul_t.1} parent=5 // pred_check
        _
      $region10: #{pallas_matmul_t.1} parent=5 // pred_check_branch
        %144 = sbr.rel (%p141) target = $region12
      $region11: #{pallas_matmul_t.1} parent=5 // pred_region
        %s145 = ssub.s32 %s16, 1
        // Predicated region
        $region13: #{pallas_matmul_t.1} parent=11 // pred_check
          %p146 = pneg %p37
        $region14: #{pallas_matmul_t.1} parent=11 // pred_check_branch
          %148 = sbr.rel (%p146) target = $region16
        $region15: #{pallas_matmul_t.1} parent=11 // pred_region
          _
        $region16: #{pallas_matmul_t.1} parent=11 // pred_fallthru
          _
        // Predicated region
        $region17: #{pallas_matmul_t.1} parent=11 // pred_check
          %p149 = pneg %p84
        $region18: #{pallas_matmul_t.1} parent=11 // pred_check_branch
          %151 = sbr.rel (%p149) target = $region20
        $region19: #{pallas_matmul_t.1} parent=11 // pred_region
          _
        $region20: #{pallas_matmul_t.1} parent=11 // pred_fallthru
          _
        // Predicated region
        $region21: #{pallas_matmul_t.1} parent=11 // pred_check
          %p152 = pneg %p105
        $region22: #{pallas_matmul_t.1} parent=11 // pred_check_branch
          %154 = sbr.rel (%p152) target = $region24
        $region23: #{pallas_matmul_t.1} parent=11 // pred_region
          _
        $region24: #{pallas_matmul_t.1} parent=11 // pred_fallthru
          _
      $region12: #{pallas_matmul_t.1} parent=5 // pred_fallthru
        _
      %p155 = scmp.lt.s32.totalorder %s16, 4
      // Predicated region
      $region25: #{pallas_matmul_t.1} parent=5 // pred_check
        %p156 = pneg %p155
      $region26: #{pallas_matmul_t.1} parent=5 // pred_check_branch
        %158 = sbr.rel (%p156) target = $region28
      $region27: #{pallas_matmul_t.1} parent=5 // pred_region
        // Predicated region
        $region29: #{pallas_matmul_t.1} parent=27 // pred_check
          %p159 = pneg %p57
        $region30: #{pallas_matmul_t.1} parent=27 // pred_check_branch
          %161 = sbr.rel (%p159) target = $region32
        $region31: #{pallas_matmul_t.1} parent=27 // pred_region
          %s162 = sand.u32 %s47, 1
          %s163 = scalar_lea.sflag [#allocation3], %s162
          %s164 = sand.u32 %s47, 1
          %s165 = smul.addr %s164, 112
          %s166 = scalar_lea.vmem [#allocation2], %s165
          %s167 = smul.u32 4, %s16
          %169 = vsyncadd %s163, 0
          %s170 = smul.addr %s167, 4
          %s171 = scalar_lea.hbm %s1, %s170
          %s172 = sshll.u32 %s171, 4
          %s173 = int_to_ptr.hbm [resolvable:$true] %s172
          %s174 = sshll.u32 %s166, 4
          %s175 = int_to_ptr.vmem [resolvable:$true] %s174
          %180 = dma.hbm_to_vmem [thread:$0]  %s173, 1792, %s175, %s163, 1024, 256, 16
        $region32: #{pallas_matmul_t.1} parent=27 // pred_fallthru
          _
      $region28: #{pallas_matmul_t.1} parent=5 // pred_fallthru
        _
      %p181 = scmp.le.s32.totalorder 1, %s16
      %p182 = scmp.lt.s32.totalorder %s16, 5
      %p183 = pnand %p181, %p182
      %p184 = pneg %p183
      // Predicated region
      $region33: #{pallas_matmul_t.1} parent=5 // pred_check
        _
      $region34: #{pallas_matmul_t.1} parent=5 // pred_check_branch
        %186 = sbr.rel (%p183) target = $region36
      $region35: #{pallas_matmul_t.1} parent=5 // pred_region
        %s187 = ssub.s32 %s16, 1
        %s188 = sand.u32 %s50, 1
        %s189 = scalar_lea.sflag [#allocation3], %s188
        %s190 = sand.u32 %s50, 1
        %s191 = smul.addr %s190, 112
        %s192 = scalar_lea.vmem [#allocation2], %s191
        // Predicated region
        $region37: #{pallas_matmul_t.1} parent=35 // pred_check
          %p193 = pneg %p63
        $region38: #{pallas_matmul_t.1} parent=35 // pred_check_branch
          %195 = sbr.rel (%p193) target = $region40
        $region39: #{pallas_matmul_t.1} parent=35 // pred_region
          %197 = dma.done %s189, 1792
        $region40: #{pallas_matmul_t.1} parent=35 // pred_fallthru
          _
        %p198 = pneg %p37
        %p199 = pneg %p34
        %s200 = sand.u32 %s50, 1
        %s201 = scalar_lea.sflag [#allocation3], %s200
        %s202 = sand.u32 %s50, 1
        %s203 = smul.addr %s202, 112
        %s204 = scalar_lea.vmem [#allocation2], %s203
        %p205 = pneg %p63
        %p206 = pneg %p60
        %p207 = pneg %p84
        %p208 = pneg %p81
        %p209 = pneg %p105
        %p210 = pneg %p102
        %p211 = pneg %p131
        %p212 = pneg %p128
        %s213 = sand.u32 %s118, 1
        %s214 = scalar_lea.sflag [#allocation4], %s213
        %s215 = sand.u32 %s118, 1
        %s216 = smul.addr %s215, 64
        %s217 = scalar_lea.vmem [#allocation5], %s216
        %s218 = smul.u32 4, %s21
        %s219 = smul.u32 4, %s21
        %v221 = vld [vmem:[%s0] sm:$0xf]
        %v222 = vld [vmem:[%s0 + $0x4] sm:$0xf]
        %v223 = vld [vmem:[%s192] sm:$0xff]
        %v224 = vld [vmem:[%s192 + $0x8] sm:$0xff]
        %v225 = vld [vmem:[%s192 + $0x10] sm:$0xff]
        %v226 = vld [vmem:[%s192 + $0x18] sm:$0xff]
        %v227 = vld [vmem:[%s192 + $0x20] sm:$0xff]
        %v228 = vld [vmem:[%s192 + $0x28] sm:$0xff]
        %v229 = vld [vmem:[%s192 + $0x30] sm:$0xff]
        %v230 = vld [vmem:[%s192 + $0x38] sm:$0xff]
        %v231 = vld [vmem:[%s192 + $0x40] sm:$0xff]
        %v232 = vld [vmem:[%s192 + $0x48] sm:$0xff]
        %v233 = vld [vmem:[%s192 + $0x50] sm:$0xff]
        %v234 = vld [vmem:[%s192 + $0x58] sm:$0xff]
        %v235 = vld [vmem:[%s192 + $0x60] sm:$0x11]
        %v236 = vld [vmem:[%s192 + $0x68] sm:$0x11]
        %v239 = vunpack.c.l.b16 %v221
        %v240 = vunpack.c.l.b16 %v222
        %v241 = vpack.c.b16 %v240, %v239
        %v256 = vunpack.c.l.b16 %v223
        %v257 = vunpack.c.h.b16 %v223
        %v258 = vunpack.c.l.b16 %v224
        %v259 = vunpack.c.h.b16 %v224
        %v260 = vunpack.c.l.b16 %v225
        %v261 = vunpack.c.h.b16 %v225
        %v262 = vunpack.c.l.b16 %v226
        %v263 = vunpack.c.h.b16 %v226
        %v264 = vunpack.c.l.b16 %v227
        %v265 = vunpack.c.h.b16 %v227
        %v266 = vunpack.c.l.b16 %v228
        %v267 = vunpack.c.h.b16 %v228
        %v268 = vunpack.c.l.b16 %v229
        %v269 = vunpack.c.h.b16 %v229
        %v270 = vunpack.c.l.b16 %v230
        %v271 = vunpack.c.h.b16 %v230
        %v272 = vunpack.c.l.b16 %v231
        %v273 = vunpack.c.h.b16 %v231
        %v274 = vunpack.c.l.b16 %v232
        %v275 = vunpack.c.h.b16 %v232
        %v276 = vunpack.c.l.b16 %v233
        %v277 = vunpack.c.h.b16 %v233
        %v278 = vunpack.c.l.b16 %v234
        %v279 = vunpack.c.h.b16 %v234
        %v280 = vunpack.c.l.b16 %v235
        %v281 = vunpack.c.h.b16 %v235
        %v282 = vunpack.c.l.b16 %v236
        %v283 = vunpack.c.h.b16 %v236
        %v284 = vpack.c.b16 %v260, %v256
        %v285 = vpack.c.b16 %v261, %v257
        %v286 = vpack.c.b16 %v262, %v258
        %v287 = vpack.c.b16 %v263, %v259
        %v288 = vpack.c.b16 %v268, %v264
        %v289 = vpack.c.b16 %v269, %v265
        %v290 = vpack.c.b16 %v270, %v266
        %v291 = vpack.c.b16 %v271, %v267
        %v292 = vpack.c.b16 %v276, %v272
        %v293 = vpack.c.b16 %v277, %v273
        %v294 = vpack.c.b16 %v278, %v274
        %v295 = vpack.c.b16 %v279, %v275
        %v296 = vpack.c.b16 %v280, %v280
        %v297 = vpack.c.b16 %v281, %v281
        %v298 = vpack.c.b16 %v282, %v282
        %v299 = vpack.c.b16 %v283, %v283
        %vm312 = vcmask 400384
        %v314 = vsel %vm312, %v241, 0
        %vm316 = vcmask 1040384
        %v317 = vsel 0, 4294967295, 65535
        %v318 = vsel %vm316, %v317, 0
        %v320 = vand.u32 %v296, %v318
        %v323 = vand.u32 %v297, %v318
        %v326 = vand.u32 %v298, %v318
        %v329 = vand.u32 %v299, %v318
        %331 = vmatpush.bf16.msra.mxu0 0
        %332 = vmatpush.bf16.msra.mxu0 0
        %333 = vmatpush.bf16.msra.mxu0 0
        %334 = vmatpush.bf16.msra.mxu0 0
        %335 = vmatpush.bf16.msra.mxu0 %v320
        %336 = vmatpush.bf16.msra.mxu0 %v292
        %337 = vmatpush.bf16.msra.mxu0 %v288
        %338 = vmatpush.bf16.msra.mxu0 %v284
        %339 = vmatmul.bf16.gmra.mxu0 %v314
        %v340 = vpop.f32.mrf.mxu0
        %v341 = vadd.f32 0.0, %v340
        %v342 = vpop.f32.mrf.mxu0
        %v343 = vadd.f32 0.0, %v342
        %344 = vdwg.mxu0
        %345 = vmatpush.bf16.msra.mxu0 0
        %346 = vmatpush.bf16.msra.mxu0 0
        %347 = vmatpush.bf16.msra.mxu0 0
        %348 = vmatpush.bf16.msra.mxu0 0
        %349 = vmatpush.bf16.msra.mxu0 %v323
        %350 = vmatpush.bf16.msra.mxu0 %v293
        %351 = vmatpush.bf16.msra.mxu0 %v289
        %352 = vmatpush.bf16.msra.mxu0 %v285
        %353 = vmatmul.bf16.gmra.mxu0 %v314
        %v354 = vpop.f32.mrf.mxu0
        %v355 = vadd.f32 0.0, %v354
        %v356 = vpop.f32.mrf.mxu0
        %v357 = vadd.f32 0.0, %v356
        %358 = vdwg.mxu0
        %359 = vmatpush.bf16.msra.mxu0 0
        %360 = vmatpush.bf16.msra.mxu0 0
        %361 = vmatpush.bf16.msra.mxu0 0
        %362 = vmatpush.bf16.msra.mxu0 0
        %363 = vmatpush.bf16.msra.mxu0 %v326
        %364 = vmatpush.bf16.msra.mxu0 %v294
        %365 = vmatpush.bf16.msra.mxu0 %v290
        %366 = vmatpush.bf16.msra.mxu0 %v286
        %367 = vmatmul.bf16.gmra.mxu0 %v314
        %v368 = vpop.f32.mrf.mxu0
        %v369 = vadd.f32 0.0, %v368
        %v370 = vpop.f32.mrf.mxu0
        %v371 = vadd.f32 0.0, %v370
        %372 = vdwg.mxu0
        %373 = vmatpush.bf16.msra.mxu0 0
        %374 = vmatpush.bf16.msra.mxu0 0
        %375 = vmatpush.bf16.msra.mxu0 0
        %376 = vmatpush.bf16.msra.mxu0 0
        %377 = vmatpush.bf16.msra.mxu0 %v329
        %378 = vmatpush.bf16.msra.mxu0 %v295
        %379 = vmatpush.bf16.msra.mxu0 %v291
        %380 = vmatpush.bf16.msra.mxu0 %v287
        %381 = vmatmul.bf16.gmra.mxu0 %v314
        %v382 = vpop.f32.mrf.mxu0
        %v383 = vadd.f32 0.0, %v382
        %v384 = vpop.f32.mrf.mxu0
        %v385 = vadd.f32 0.0, %v384
        %386 = vdwg.mxu0
        %v387 = vld [vmem:[%s2] sm:$0xff]
        %v388 = vld [vmem:[%s2 + $0x8] sm:$0xff]
        %390 = vset.pattern.permute.xlu0 0
        %391 = vperm.xlu0 %390, %v387
        %v392 = vpop.permute.xlu0 %391
        %395 = vset.pattern.permute.xlu0 0
        %396 = vperm.xlu0 %395, %v388
        %v397 = vpop.permute.xlu0 %396
        %v399 = vmul.f32 %v341, %v392
        %v400 = vmul.f32 %v355, %v392
        %v401 = vmul.f32 %v369, %v392
        %v402 = vmul.f32 %v383, %v392
        %v403 = vmul.f32 %v343, %v397
        %v404 = vmul.f32 %v357, %v397
        %v405 = vmul.f32 %v371, %v397
        %v406 = vmul.f32 %v385, %v397
        %v407 = vld [vmem:[%s3] sm:$0xff]
        %v408 = vld [vmem:[%s3 + $0x8] sm:$0xff]
        %410 = vset.pattern.permute.xlu0 0
        %411 = vperm.xlu0 %410, %v407
        %v412 = vpop.permute.xlu0 %411
        %415 = vset.pattern.permute.xlu0 0
        %416 = vperm.xlu0 %415, %v408
        %v417 = vpop.permute.xlu0 %416
        %v419 = vadd.f32 %v399, %v412
        %v420 = vadd.f32 %v400, %v412
        %v421 = vadd.f32 %v401, %v412
        %v422 = vadd.f32 %v402, %v412
        %v423 = vadd.f32 %v403, %v417
        %v424 = vadd.f32 %v404, %v417
        %v425 = vadd.f32 %v405, %v417
        %v426 = vadd.f32 %v406, %v417
        %v427 = vmax.f32 %v419, 0.0
        %v428 = vmax.f32 %v420, 0.0
        %v429 = vmax.f32 %v421, 0.0
        %v430 = vmax.f32 %v422, 0.0
        %v431 = vmax.f32 %v423, 0.0
        %v432 = vmax.f32 %v424, 0.0
        %v433 = vmax.f32 %v425, 0.0
        %v434 = vmax.f32 %v426, 0.0
        %435 = vst [vmem:[%s217] sm:$0xff] %v427
        %436 = vst [vmem:[%s217 + $0x8] sm:$0xff] %v428
        %437 = vst [vmem:[%s217 + $0x10] sm:$0xff] %v429
        %438 = vst [vmem:[%s217 + $0x18] sm:$0xff] %v430
        %439 = vst [vmem:[%s217 + $0x20] sm:$0xff] %v431
        %440 = vst [vmem:[%s217 + $0x28] sm:$0xff] %v432
        %441 = vst [vmem:[%s217 + $0x30] sm:$0xff] %v433
        %442 = vst [vmem:[%s217 + $0x38] sm:$0xff] %v434
        %s443 = sand.u32 %s118, 1
        %s444 = scalar_lea.sflag [#allocation4], %s443
        %s445 = sand.u32 %s118, 1
        %s446 = smul.addr %s445, 64
        %s447 = scalar_lea.vmem [#allocation5], %s446
        // Predicated region
        $region41: #{pallas_matmul_t.1} parent=35 // pred_check
          %p448 = pneg %p128
        $region42: #{pallas_matmul_t.1} parent=35 // pred_check_branch
          %450 = sbr.rel (%p448) target = $region44
        $region43: #{pallas_matmul_t.1} parent=35 // pred_region
          %s451 = smul.u32 4, %s21
          %453 = vsyncadd %s444, 0
          %s454 = smul.addr %s451, 8
          %s455 = scalar_lea.hbm %s4, %s454
          %s456 = sshll.u32 %s447, 4
          %s457 = int_to_ptr.vmem [resolvable:$true] %s456
          %s458 = sshll.u32 %s455, 4
          %s459 = int_to_ptr.hbm [resolvable:$true] %s458
          %464 = dma.vmem_to_hbm [thread:$0]  %s457, 1024, %s459, %s444, 512, 2048, 32
        $region44: #{pallas_matmul_t.1} parent=35 // pred_fallthru
          _
      $region36: #{pallas_matmul_t.1} parent=5 // pred_fallthru
        _
      %p465 = scmp.le.s32.totalorder 2, %s16
      // Predicated region
      $region45: #{pallas_matmul_t.1} parent=5 // pred_check
        %p466 = pneg %p465
      $region46: #{pallas_matmul_t.1} parent=5 // pred_check_branch
        %468 = sbr.rel (%p466) target = $region48
      $region47: #{pallas_matmul_t.1} parent=5 // pred_region
        %s469 = ssub.s32 %s16, 2
        // Predicated region
        $region49: #{pallas_matmul_t.1} parent=47 // pred_check
          %p470 = pneg %p134
        $region50: #{pallas_matmul_t.1} parent=47 // pred_check_branch
          %472 = sbr.rel (%p470) target = $region52
        $region51: #{pallas_matmul_t.1} parent=47 // pred_region
          %s473 = sand.u32 %s119, 1
          %s474 = scalar_lea.sflag [#allocation4], %s473
          %s475 = sand.u32 %s119, 1
          %s476 = smul.addr %s475, 64
          %s477 = scalar_lea.vmem [#allocation5], %s476
          %479 = dma.done %s474, 1024
        $region52: #{pallas_matmul_t.1} parent=47 // pred_fallthru
          _
      $region48: #{pallas_matmul_t.1} parent=5 // pred_fallthru
        _
    $region6: #{pallas_matmul_t.1} parent=1 // loop_footer
      %s20 = sadd.s32 1, %s16
    $region7: #{pallas_matmul_t.1} parent=1 // loop_footer_branch
      %15 = sbr.rel target = $region3
    $region8: #{pallas_matmul_t.1} parent=1 // loop_exit
      _
    %480 = vsyncpa [#allocation3], 1
    %s481 = scalar_lea.sflag [#allocation3], 1
    %482 = vsyncpa %s481, 1
    %483 = vsyncpa [#allocation4], 1
    %s484 = scalar_lea.sflag [#allocation4], 1
    %485 = vsyncpa %s484, 1

</llo_original>
